<compile_context>
chip_gen: v6e
topology: v6e:2x2x1
jax: 0.10.0
libtpu: 0.0.40
codegen_flags: <defaults>
</compile_context>

<pallas_src>
import jax
import jax.numpy as jnp
import numpy as np
from jax.experimental import pallas as pl
from jax.experimental.pallas import tpu as pltpu

NEG_INF = -1e30


def bidaf_kernel(c_lens_ref, q_lens_ref,                    # SMEM scalar prefetch, (B,)
                 c_ref, q_ref, cw_ref, qw_ref, cqw_ref, bias_ref,
                 x_ref):
    Bt, c_len, H = c_ref.shape
    q_len = q_ref.shape[1]
    base = pl.program_id(0) * Bt

    c = c_ref[...]                  # (Bt, c_len, H)  I/O dtype (f32 or bf16)
    q = q_ref[...]                  # (Bt, q_len, H)
    cw = cw_ref[...]                # (1, H) f32  == c_weight.T
    qw = qw_ref[...]                # (1, H) f32  == q_weight.T
    cqw = cqw_ref[...]              # (1, H) f32  == cq_weight
    bias = bias_ref[...]            # (1, 1) f32

    # VPU math in f32 after load (no bf16 VPU on v5e); MXU gets I/O dtype.
    c_f = c.astype(jnp.float32)
    q_f = q.astype(jnp.float32)

    # ---- similarity matrix  s[b,i,j] = c.cw + q.qw + (c*cqw).q + bias ------
    s0 = jnp.sum(c_f * cw, axis=-1, keepdims=True)          # (Bt, c_len, 1)  VPU
    s1 = jnp.sum(q_f * qw, axis=-1)                          # (Bt, q_len)     VPU
    c_cq = (c_f * cqw).astype(c.dtype)                       # back to I/O dtype
    s2 = jnp.einsum('bcd,bqd->bcq', c_cq, q,
                    preferred_element_type=jnp.float32)      # (Bt,c_len,q_len) MXU
    s = s2 + s0 + s1[:, None, :] + bias                      # (Bt, c_len, q_len)

    # ---- masks rebuilt in-kernel from per-example lengths (SMEM scalars) ----
    c_lens = jnp.concatenate(
        [jnp.full((1, 1), c_lens_ref[base + b], dtype=jnp.int32)
         for b in range(Bt)], axis=0)                        # (Bt, 1)
    q_lens = jnp.concatenate(
        [jnp.full((1, 1), q_lens_ref[base + b], dtype=jnp.int32)
         for b in range(Bt)], axis=0)                        # (Bt, 1)
    q_valid = (jax.lax.broadcasted_iota(jnp.int32, (Bt, 1, q_len), 2)
               < q_lens[:, :, None])                         # (Bt, 1, q_len)
    c_valid = (jax.lax.broadcasted_iota(jnp.int32, (Bt, c_len, 1), 1)
               < c_lens[:, :, None])                         # (Bt, c_len, 1)

    # ---- masked softmax over the query axis (torch dim=2) ------------------
    masked1 = jnp.where(q_valid, s, NEG_INF)
    m1 = jnp.max(masked1, axis=2, keepdims=True)
    e1 = jnp.exp(masked1 - m1)
    p1 = e1 * pl.reciprocal(jnp.sum(e1, axis=2, keepdims=True), approx=True)

    # ---- masked softmax over the context axis (torch dim=1) ----------------
    masked2 = jnp.where(c_valid, s, NEG_INF)
    m2 = jnp.max(masked2, axis=1, keepdims=True)
    e2 = jnp.exp(masked2 - m2)
    p2 = e2 * pl.reciprocal(jnp.sum(e2, axis=1, keepdims=True), approx=True)

    # ---- attention outputs --------------------------------------------------
    # q2c reassociated: b = p1 @ (p2^T @ c)  (no (c_len, c_len) intermediate)
    t = jnp.einsum('bkq,bkd->bqd', p2, c_f,
                   preferred_element_type=jnp.float32)       # (Bt, q_len, H)
    # fuse the two p1 matmuls (shared LHS, K = q_len) into one N = 2H matmul
    qt = jnp.concatenate([q_f, t], axis=-1)                  # (Bt, q_len, 2H)
    ab = jnp.einsum('bcq,bqe->bce', p1, qt,
                    preferred_element_type=jnp.float32)      # (Bt, c_len, 2H)
    a = ab[..., :H]
    b = ab[..., H:]

    # x = [c, a, c*a, c*b] — single lane-dense store of the 4H-wide row
    x = jnp.concatenate([c_f, a, c_f * a, c_f * b], axis=-1)
    x_ref[...] = x.astype(x_ref.dtype)


# --------------------------- generation-aware sizing ------------------------

def _tpu_kind():
    try:
        return jax.devices()[0].device_kind.lower()
    except Exception:
        return ""


def _vmem_limit_and_num_tc():
    kind = _tpu_kind()
    if "7" in kind:                        # v7x: 2 TensorCores, 64 MiB VMEM/TC
        return 48 * 1024 * 1024, 2
    if "v5p" in kind or "v4" in kind:      # megacore parts, 128 MiB VMEM
        return 64 * 1024 * 1024, 2
    if "v5" in kind or "v6" in kind:       # v5e / v6e: 1 TC, 128 MiB VMEM
        return 96 * 1024 * 1024, 1
    return 32 * 1024 * 1024, 1             # unknown: conservative defaults


def _per_item_vmem_bytes(c_len, q_len, H, io_itemsize):
    f32 = 4
    io_blocks = 2 * (c_len * H + q_len * H + c_len * 4 * H) * io_itemsize  # dbl-buffered DMA
    cq_live = 8 * c_len * q_len * f32     # s2, s, masked/exp/prob for both softmaxes
    ch_live = 12 * c_len * H * f32        # c_f, ab(2H), a, b, c*a, c*b, x(4H)
    qh_live = 4 * q_len * H * f32         # q_f, t, qt(2H)
    return io_blocks + cq_live + ch_live + qh_live


def _choose_block_b(B, c_len, q_len, H, io_itemsize, vmem_limit, num_tc):
    budget = int(0.7 * vmem_limit)        # headroom for compiler scratch
    per_item = _per_item_vmem_bytes(c_len, q_len, H, io_itemsize)
    max_bb = max(1, budget // per_item)
    if num_tc > 1:
        # keep >= num_tc grid steps so every TensorCore gets work
        max_bb = min(max_bb, max(1, B // num_tc))
    divisors = [d for d in range(1, B + 1) if B % d == 0 and d <= max_bb]
    if not divisors:
        return 1
    if num_tc > 1:
        balanced = [d for d in divisors if (B // d) % num_tc == 0]
        if balanced:
            return max(balanced)
    return max(divisors)


# --------------------------------- wrapper -----------------------------------

def bidaf_attention(c, q, c_lens, q_lens, c_weight, q_weight, cq_weight, bias,
                    *, block_b=None, vmem_limit_bytes=None):
    """BiDAF attention forward (eval mode).

    c: (B, c_len, H), q: (B, q_len, H) — f32 or bf16 (output matches).
    c_lens / q_lens: (B,) int valid lengths (BiDAF masks are prefix masks).
    Weights keep their torch shapes: (H,1), (H,1), (1,1,H), (1,).
    Returns (B, c_len, 4*H) in c.dtype.
    """
    B, c_len, H = c.shape
    q_len = q.shape[1]
    assert q.dtype == c.dtype

    cw = c_weight.astype(jnp.float32).reshape(1, H)
    qw = q_weight.astype(jnp.float32).reshape(1, H)
    cqw = cq_weight.astype(jnp.float32).reshape(1, H)
    b2 = bias.astype(jnp.float32).reshape(1, 1)
    c_lens = c_lens.astype(jnp.int32).reshape(B)
    q_lens = q_lens.astype(jnp.int32).reshape(B)

    auto_vmem, num_tc = _vmem_limit_and_num_tc()
    if vmem_limit_bytes is None:
        vmem_limit_bytes = auto_vmem
    if block_b is None:
        block_b = _choose_block_b(B, c_len, q_len, H,
                                  jnp.dtype(c.dtype).itemsize,
                                  vmem_limit_bytes, num_tc)
    assert B % block_b == 0

    grid_spec = pltpu.PrefetchScalarGridSpec(
        num_scalar_prefetch=2,                     # c_lens, q_lens -> SMEM
        grid=(B // block_b,),
        in_specs=[
            pl.BlockSpec((block_b, c_len, H), lambda i, *_: (i, 0, 0)),
            pl.BlockSpec((block_b, q_len, H), lambda i, *_: (i, 0, 0)),
            pl.BlockSpec((1, H), lambda i, *_: (0, 0)),
            pl.BlockSpec((1, H), lambda i, *_: (0, 0)),
            pl.BlockSpec((1, H), lambda i, *_: (0, 0)),
            pl.BlockSpec((1, 1), lambda i, *_: (0, 0)),
        ],
        out_specs=pl.BlockSpec((block_b, c_len, 4 * H), lambda i, *_: (i, 0, 0)),
    )

    return pl.pallas_call(
        bidaf_kernel,
        out_shape=jax.ShapeDtypeStruct((B, c_len, 4 * H), c.dtype),
        grid_spec=grid_spec,
        compiler_params=pltpu.CompilerParams(
            dimension_semantics=("parallel",),
            vmem_limit_bytes=int(vmem_limit_bytes),
        ),
    )(c_lens, q_lens, c, q, cw, qw, cqw, b2)


def bidaf_attention_from_masks(c, q, c_mask, q_mask, c_weight, q_weight,
                               cq_weight, bias, **kw):
    """Interface-compatible wrapper taking 0/1 masks (BiDAF padding masks are
    prefix masks, so per-example valid lengths describe them exactly)."""
    c_lens = jnp.sum(c_mask.astype(jnp.int32), axis=-1)
    q_lens = jnp.sum(q_mask.astype(jnp.int32), axis=-1)
    return bidaf_attention(c, q, c_lens, q_lens, c_weight, q_weight,
                           cq_weight, bias, **kw)


# ------------------------------ pure-JAX reference ---------------------------

def bidaf_reference(c, q, c_mask, q_mask, c_weight, q_weight, cq_weight, bias):
    """Pure-JAX reference mirroring the PyTorch forward (eval mode)."""
    B, c_len, H = c.shape
    q_len = q.shape[1]
    s0 = jnp.matmul(c, c_weight)                                  # (B, c_len, 1)
    s1 = jnp.transpose(jnp.matmul(q, q_weight), (0, 2, 1))        # (B, 1, q_len)
    s2 = jnp.matmul(c * cq_weight, jnp.transpose(q, (0, 2, 1)))   # (B, c_len, q_len)
    s = s0 + s1 + s2 + bias

    cm = c_mask.astype(jnp.float32).reshape(B, c_len, 1)
    qm = q_mask.astype(jnp.float32).reshape(B, 1, q_len)

    def msoftmax(logits, mask, axis):
        ml = mask * logits + (1.0 - mask) * NEG_INF
        return jax.nn.softmax(ml, axis=axis)

    s1p = msoftmax(s, qm, 2)
    s2p = msoftmax(s, cm, 1)
    a = jnp.matmul(s1p, q)
    b = jnp.matmul(jnp.matmul(s1p, jnp.transpose(s2p, (0, 2, 1))), c)
    return jnp.concatenate([c, a, c * a, c * b], axis=2)


if __name__ == "__main__":
    B, c_len, q_len, H = 2, 16, 8, 32

    key = jax.random.PRNGKey(0)
    k_c, k_q, k_cw, k_qw, k_cqw = jax.random.split(key, 5)

    c = jax.random.normal(k_c, (B, c_len, H), dtype=jnp.float32)
    q = jax.random.normal(k_q, (B, q_len, H), dtype=jnp.float32)

    # prefix padding: valid lengths per example
    c_lengths = np.array([16, 12], dtype=np.int32)
    q_lengths = np.array([8, 5], dtype=np.int32)
    c_mask = jnp.asarray((np.arange(c_len)[None, :] < c_lengths[:, None]).astype(np.float32))
    q_mask = jnp.asarray((np.arange(q_len)[None, :] < q_lengths[:, None]).astype(np.float32))
    c_lens = jnp.asarray(c_lengths)
    q_lens = jnp.asarray(q_lengths)

    # deterministic xavier_uniform-style init (matching torch shapes)
    bound_w = float(np.sqrt(6.0 / (H + 1)))
    bound_cq = float(np.sqrt(6.0 / (H + H)))
    c_weight = jax.random.uniform(k_cw, (H, 1), minval=-bound_w, maxval=bound_w,
                                  dtype=jnp.float32)
    q_weight = jax.random.uniform(k_qw, (H, 1), minval=-bound_w, maxval=bound_w,
                                  dtype=jnp.float32)
    cq_weight = jax.random.uniform(k_cqw, (1, 1, H), minval=-bound_cq, maxval=bound_cq,
                                   dtype=jnp.float32)
    bias = jnp.zeros((1,), dtype=jnp.float32)

    ref = jax.block_until_ready(
        bidaf_reference(c, q, c_mask, q_mask, c_weight, q_weight, cq_weight, bias))

    # f32 path, generation-aware block_b heuristic (tolerance loosened slightly
    # for the approx-reciprocal softmax normalization)
    out = jax.block_until_ready(
        bidaf_attention(c, q, c_lens, q_lens, c_weight, q_weight, cq_weight, bias))
    assert out.shape == (B, c_len, 4 * H), out.shape
    np.testing.assert_allclose(np.asarray(out), np.asarray(ref), rtol=1e-2, atol=1e-2)

    # explicit block_b=1 (grid=(2,)) and block_b=2 (batched, grid=(1,)) paths
    for bb in (1, 2):
        out_bb = jax.block_until_ready(
            bidaf_attention(c, q, c_lens, q_lens, c_weight, q_weight, cq_weight,
                            bias, block_b=bb))
        np.testing.assert_allclose(np.asarray(out_bb), np.asarray(ref),
                                   rtol=1e-2, atol=1e-2)

    # mask-based interface wrapper (prefix masks -> lengths)
    out_m = jax.block_until_ready(
        bidaf_attention_from_masks(c, q, c_mask, q_mask, c_weight, q_weight,
                                   cq_weight, bias))
    np.testing.assert_allclose(np.asarray(out_m), np.asarray(ref),
                               rtol=1e-2, atol=1e-2)

    # bf16 I/O path (halved HBM traffic); compare against the f32 reference fed
    # with bf16-rounded activations, loose tolerance for bf16 MXU rounding.
    c_bf, q_bf = c.astype(jnp.bfloat16), q.astype(jnp.bfloat16)
    ref_bf = jax.block_until_ready(
        bidaf_reference(c_bf.astype(jnp.float32), q_bf.astype(jnp.float32),
                        c_mask, q_mask, c_weight, q_weight, cq_weight, bias))
    out_bf = jax.block_until_ready(
        bidaf_attention(c_bf, q_bf, c_lens, q_lens, c_weight, q_weight,
                        cq_weight, bias))
    assert out_bf.dtype == jnp.bfloat16
    np.testing.assert_allclose(np.asarray(out_bf, dtype=np.float32),
                               np.asarray(ref_bf), rtol=1e-1, atol=2e-1)

    print("KERNEL_OK")
</pallas_src>

<mosaic_0001>
module attributes {stable_mosaic.version = 11 : i64} {
  func.func @bidaf_kernel(%arg0: i32, %arg1: memref<2xi32, #tpu.memory_space<smem>>, %arg2: memref<2xi32, #tpu.memory_space<smem>>, %arg3: memref<2x16x32xf32, #tpu.memory_space<vmem>>, %arg4: memref<2x8x32xf32, #tpu.memory_space<vmem>>, %arg5: memref<1x32xf32, #tpu.memory_space<vmem>>, %arg6: memref<1x32xf32, #tpu.memory_space<vmem>>, %arg7: memref<1x32xf32, #tpu.memory_space<vmem>>, %arg8: memref<1x1xf32, #tpu.memory_space<vmem>>, %arg9: memref<2x16x128xf32, #tpu.memory_space<vmem>>) attributes {dimension_semantics = [#tpu.dimension_semantics<parallel>], iteration_bounds = array<i64: 1>, scalar_prefetch = 2 : i64, scratch_operands = 0 : i64, tpu.core_type = #tpu.core_type<tc>, window_params = [{transform_indices = @transform_0, window_bounds = array<i64: 2, 16, 32>}, {transform_indices = @transform_1, window_bounds = array<i64: 2, 8, 32>}, {pipeline_mode = #tpu.pipeline_mode<synchronous>, transform_indices = @transform_2, window_bounds = array<i64: 1, 32>}, {pipeline_mode = #tpu.pipeline_mode<synchronous>, transform_indices = @transform_3, window_bounds = array<i64: 1, 32>}, {pipeline_mode = #tpu.pipeline_mode<synchronous>, transform_indices = @transform_4, window_bounds = array<i64: 1, 32>}, {pipeline_mode = #tpu.pipeline_mode<synchronous>, transform_indices = @transform_5, window_bounds = array<i64: 1, 1>}, {transform_indices = @transform_6, window_bounds = array<i64: 2, 16, 128>}]} {
    %c2_i32 = arith.constant 2 : i32
    %0 = arith.muli %arg0, %c2_i32 : i32
    %c0 = arith.constant 0 : index
    %c0_0 = arith.constant 0 : index
    %c0_1 = arith.constant 0 : index
    %1 = vector.load %arg3[%c0, %c0_0, %c0_1] : memref<2x16x32xf32, #tpu.memory_space<vmem>>, vector<2x16x32xf32>
    %c0_2 = arith.constant 0 : index
    %c0_3 = arith.constant 0 : index
    %c0_4 = arith.constant 0 : index
    %2 = vector.load %arg4[%c0_2, %c0_3, %c0_4] : memref<2x8x32xf32, #tpu.memory_space<vmem>>, vector<2x8x32xf32>
    %c0_5 = arith.constant 0 : index
    %c0_6 = arith.constant 0 : index
    %3 = vector.load %arg5[%c0_5, %c0_6] : memref<1x32xf32, #tpu.memory_space<vmem>>, vector<1x32xf32>
    %c0_7 = arith.constant 0 : index
    %c0_8 = arith.constant 0 : index
    %4 = vector.load %arg6[%c0_7, %c0_8] : memref<1x32xf32, #tpu.memory_space<vmem>>, vector<1x32xf32>
    %c0_9 = arith.constant 0 : index
    %c0_10 = arith.constant 0 : index
    %5 = vector.load %arg7[%c0_9, %c0_10] : memref<1x32xf32, #tpu.memory_space<vmem>>, vector<1x32xf32>
    %c0_11 = arith.constant 0 : index
    %c0_12 = arith.constant 0 : index
    %6 = vector.load %arg8[%c0_11, %c0_12] : memref<1x1xf32, #tpu.memory_space<vmem>>, vector<1x1xf32>
    %7 = vector.shape_cast %3 : vector<1x32xf32> to vector<1x1x32xf32>
    %8 = vector.broadcast %7 : vector<1x1x32xf32> to vector<2x16x32xf32>
    %9 = arith.mulf %1, %8 : vector<2x16x32xf32>
    %cst = arith.constant dense<0.000000e+00> : vector<2x16xf32>
    %10 = vector.multi_reduction <add>, %9, %cst [2] : vector<2x16x32xf32> to vector<2x16xf32>
    %11 = vector.shape_cast %10 : vector<2x16xf32> to vector<2x16x1xf32>
    %12 = vector.shape_cast %4 : vector<1x32xf32> to vector<1x1x32xf32>
    %13 = vector.broadcast %12 : vector<1x1x32xf32> to vector<2x8x32xf32>
    %14 = arith.mulf %2, %13 : vector<2x8x32xf32>
    %cst_13 = arith.constant dense<0.000000e+00> : vector<2x8xf32>
    %15 = vector.multi_reduction <add>, %14, %cst_13 [2] : vector<2x8x32xf32> to vector<2x8xf32>
    %16 = vector.shape_cast %5 : vector<1x32xf32> to vector<1x1x32xf32>
    %17 = vector.broadcast %16 : vector<1x1x32xf32> to vector<2x16x32xf32>
    %18 = arith.mulf %1, %17 : vector<2x16x32xf32>
    "tpu.trace_start"() <{level = 10 : i32, message = "bcd,bqd->bcq"}> : () -> ()
    %cst_14 = arith.constant dense<0.000000e+00> : vector<2x16x8xf32>
    %19 = tpu.matmul %18, %2, %cst_14 {dimension_numbers = #tpu.dot_dimension_numbers<[2], [2], [1], [1], [0, 0, 0, 1, 1, 1], [0], [0]>} : vector<2x16x32xf32>, vector<2x8x32xf32>, vector<2x16x8xf32> -> vector<2x16x8xf32>
    "tpu.trace_stop"() : () -> ()
    %20 = vector.broadcast %11 : vector<2x16x1xf32> to vector<2x16x8xf32>
    %21 = arith.addf %19, %20 : vector<2x16x8xf32>
    %22 = vector.shape_cast %15 : vector<2x8xf32> to vector<2x1x8xf32>
    %23 = vector.broadcast %22 : vector<2x1x8xf32> to vector<2x16x8xf32>
    %24 = arith.addf %21, %23 : vector<2x16x8xf32>
    %25 = vector.shape_cast %6 : vector<1x1xf32> to vector<1x1x1xf32>
    %26 = vector.broadcast %25 : vector<1x1x1xf32> to vector<2x16x8xf32>
    %27 = arith.addf %24, %26 : vector<2x16x8xf32>
    %c0_i32 = arith.constant 0 : i32
    %28 = arith.addi %0, %c0_i32 : i32
    %29 = arith.index_cast %28 : i32 to index
    %30 = memref.load %arg1[%29] : memref<2xi32, #tpu.memory_space<smem>>
    %31 = vector.broadcast %30 : i32 to vector<1x1xi32>
    %c1_i32 = arith.constant 1 : i32
    %32 = arith.addi %0, %c1_i32 : i32
    %33 = arith.index_cast %32 : i32 to index
    %34 = memref.load %arg1[%33] : memref<2xi32, #tpu.memory_space<smem>>
    %35 = vector.broadcast %34 : i32 to vector<1x1xi32>
    %36 = tpu.concatenate %31, %35 in 0 : vector<1x1xi32>, vector<1x1xi32> -> vector<2x1xi32>
    %c0_i32_15 = arith.constant 0 : i32
    %37 = arith.addi %0, %c0_i32_15 : i32
    %38 = arith.index_cast %37 : i32 to index
    %39 = memref.load %arg2[%38] : memref<2xi32, #tpu.memory_space<smem>>
    %40 = vector.broadcast %39 : i32 to vector<1x1xi32>
    %c1_i32_16 = arith.constant 1 : i32
    %41 = arith.addi %0, %c1_i32_16 : i32
    %42 = arith.index_cast %41 : i32 to index
    %43 = memref.load %arg2[%42] : memref<2xi32, #tpu.memory_space<smem>>
    %44 = vector.broadcast %43 : i32 to vector<1x1xi32>
    %45 = tpu.concatenate %40, %44 in 0 : vector<1x1xi32>, vector<1x1xi32> -> vector<2x1xi32>
    %46 = tpu.iota {dimensions = array<i32: 2>} : vector<2x1x8xi32>
    %47 = vector.shape_cast %45 : vector<2x1xi32> to vector<2x1x1xi32>
    %48 = vector.broadcast %47 : vector<2x1x1xi32> to vector<2x1x8xi32>
    %49 = arith.cmpi slt, %46, %48 : vector<2x1x8xi32>
    %50 = tpu.iota {dimensions = array<i32: 1>} : vector<2x16x1xi32>
    %51 = vector.shape_cast %36 : vector<2x1xi32> to vector<2x1x1xi32>
    %52 = vector.broadcast %51 : vector<2x1x1xi32> to vector<2x16x1xi32>
    %53 = arith.cmpi slt, %50, %52 : vector<2x16x1xi32>
    %cst_17 = arith.constant -1.000000e+30 : f32
    %54 = vector.shape_cast %49 : vector<2x1x8xi1> to vector<2x1x8xi1>
    %55 = vector.broadcast %54 : vector<2x1x8xi1> to vector<2x16x8xi1>
    %56 = vector.broadcast %cst_17 : f32 to vector<2x16x8xf32>
    %57 = arith.select %55, %27, %56 : vector<2x16x8xi1>, vector<2x16x8xf32>
    %cst_18 = arith.constant dense<0xFF800000> : vector<2x16xf32>
    %58 = vector.multi_reduction <maximumf>, %57, %cst_18 [2] : vector<2x16x8xf32> to vector<2x16xf32>
    %59 = vector.shape_cast %58 : vector<2x16xf32> to vector<2x16x1xf32>
    %60 = vector.broadcast %59 : vector<2x16x1xf32> to vector<2x16x8xf32>
    %61 = arith.subf %57, %60 : vector<2x16x8xf32>
    %62 = math.exp %61 : vector<2x16x8xf32>
    %cst_19 = arith.constant dense<0.000000e+00> : vector<2x16xf32>
    %63 = vector.multi_reduction <add>, %62, %cst_19 [2] : vector<2x16x8xf32> to vector<2x16xf32>
    %64 = vector.shape_cast %63 : vector<2x16xf32> to vector<2x16x1xf32>
    %65 = tpu.reciprocal %64 {approx = true} : vector<2x16x1xf32> -> vector<2x16x1xf32>
    %66 = vector.broadcast %65 : vector<2x16x1xf32> to vector<2x16x8xf32>
    %67 = arith.mulf %62, %66 : vector<2x16x8xf32>
    %cst_20 = arith.constant -1.000000e+30 : f32
    %68 = vector.shape_cast %53 : vector<2x16x1xi1> to vector<2x16x1xi1>
    %69 = vector.broadcast %68 : vector<2x16x1xi1> to vector<2x16x8xi1>
    %70 = vector.broadcast %cst_20 : f32 to vector<2x16x8xf32>
    %71 = arith.select %69, %27, %70 : vector<2x16x8xi1>, vector<2x16x8xf32>
    %cst_21 = arith.constant dense<0xFF800000> : vector<2x8xf32>
    %72 = vector.multi_reduction <maximumf>, %71, %cst_21 [1] : vector<2x16x8xf32> to vector<2x8xf32>
    %73 = vector.shape_cast %72 : vector<2x8xf32> to vector<2x1x8xf32>
    %74 = vector.broadcast %73 : vector<2x1x8xf32> to vector<2x16x8xf32>
    %75 = arith.subf %71, %74 : vector<2x16x8xf32>
    %76 = math.exp %75 : vector<2x16x8xf32>
    %cst_22 = arith.constant dense<0.000000e+00> : vector<2x8xf32>
    %77 = vector.multi_reduction <add>, %76, %cst_22 [1] : vector<2x16x8xf32> to vector<2x8xf32>
    %78 = vector.shape_cast %77 : vector<2x8xf32> to vector<2x1x8xf32>
    %79 = tpu.reciprocal %78 {approx = true} : vector<2x1x8xf32> -> vector<2x1x8xf32>
    %80 = vector.broadcast %79 : vector<2x1x8xf32> to vector<2x16x8xf32>
    %81 = arith.mulf %76, %80 : vector<2x16x8xf32>
    "tpu.trace_start"() <{level = 10 : i32, message = "bkq,bkd->bqd"}> : () -> ()
    %cst_23 = arith.constant dense<0.000000e+00> : vector<2x8x32xf32>
    %82 = tpu.matmul %81, %1, %cst_23 {dimension_numbers = #tpu.dot_dimension_numbers<[1], [1], [2], [2], [0, 0, 0, 2, 1, 2], [0], [0]>} : vector<2x16x8xf32>, vector<2x16x32xf32>, vector<2x8x32xf32> -> vector<2x8x32xf32>
    "tpu.trace_stop"() : () -> ()
    %83 = tpu.concatenate %2, %82 in 2 : vector<2x8x32xf32>, vector<2x8x32xf32> -> vector<2x8x64xf32>
    "tpu.trace_start"() <{level = 10 : i32, message = "bcq,bqe->bce"}> : () -> ()
    %cst_24 = arith.constant dense<0.000000e+00> : vector<2x16x64xf32>
    %84 = tpu.matmul %67, %83, %cst_24 {dimension_numbers = #tpu.dot_dimension_numbers<[2], [1], [1], [2], [0, 0, 0, 1, 1, 2], [0], [0]>} : vector<2x16x8xf32>, vector<2x8x64xf32>, vector<2x16x64xf32> -> vector<2x16x64xf32>
    "tpu.trace_stop"() : () -> ()
    %85 = vector.extract_strided_slice %84 {offsets = [0, 0, 0], sizes = [2, 16, 32], strides = [1, 1, 1]} : vector<2x16x64xf32> to vector<2x16x32xf32>
    %86 = vector.extract_strided_slice %84 {offsets = [0, 0, 32], sizes = [2, 16, 32], strides = [1, 1, 1]} : vector<2x16x64xf32> to vector<2x16x32xf32>
    %87 = arith.mulf %1, %85 : vector<2x16x32xf32>
    %88 = arith.mulf %1, %86 : vector<2x16x32xf32>
    %89 = tpu.concatenate %1, %85, %87, %88 in 2 : vector<2x16x32xf32>, vector<2x16x32xf32>, vector<2x16x32xf32>, vector<2x16x32xf32> -> vector<2x16x128xf32>
    %c0_25 = arith.constant 0 : index
    %c0_26 = arith.constant 0 : index
    %c0_27 = arith.constant 0 : index
    %90 = vector.load %arg9[%c0_25, %c0_26, %c0_27] : memref<2x16x128xf32, #tpu.memory_space<vmem>>, vector<2x16x128xf32>
    tpu.vector_store %arg9[%c0_25, %c0_26, %c0_27], %89 {strides = array<i32>} : memref<2x16x128xf32, #tpu.memory_space<vmem>>, vector<2x16x128xf32>,
    return
  }
  func.func @transform_0(%arg0: i32, %arg1: memref<2xi32, #tpu.memory_space<smem>>, %arg2: memref<2xi32, #tpu.memory_space<smem>>) -> (i32, i32, i32) {
    %c0_i32 = arith.constant 0 : i32
    %c0_i32_0 = arith.constant 0 : i32
    %c0_i32_1 = arith.constant 0 : i32
    return %arg0, %c0_i32, %c0_i32_0 : i32, i32, i32
  }
  func.func @transform_1(%arg0: i32, %arg1: memref<2xi32, #tpu.memory_space<smem>>, %arg2: memref<2xi32, #tpu.memory_space<smem>>) -> (i32, i32, i32) {
    %c0_i32 = arith.constant 0 : i32
    %c0_i32_0 = arith.constant 0 : i32
    %c0_i32_1 = arith.constant 0 : i32
    return %arg0, %c0_i32, %c0_i32_0 : i32, i32, i32
  }
  func.func @transform_2(%arg0: i32, %arg1: memref<2xi32, #tpu.memory_space<smem>>, %arg2: memref<2xi32, #tpu.memory_space<smem>>) -> (i32, i32) {
    %c0_i32 = arith.constant 0 : i32
    %c0_i32_0 = arith.constant 0 : i32
    %c0_i32_1 = arith.constant 0 : i32
    return %c0_i32, %c0_i32_0 : i32, i32
  }
  func.func @transform_3(%arg0: i32, %arg1: memref<2xi32, #tpu.memory_space<smem>>, %arg2: memref<2xi32, #tpu.memory_space<smem>>) -> (i32, i32) {
    %c0_i32 = arith.constant 0 : i32
    %c0_i32_0 = arith.constant 0 : i32
    %c0_i32_1 = arith.constant 0 : i32
    return %c0_i32, %c0_i32_0 : i32, i32
  }
  func.func @transform_4(%arg0: i32, %arg1: memref<2xi32, #tpu.memory_space<smem>>, %arg2: memref<2xi32, #tpu.memory_space<smem>>) -> (i32, i32) {
    %c0_i32 = arith.constant 0 : i32
    %c0_i32_0 = arith.constant 0 : i32
    %c0_i32_1 = arith.constant 0 : i32
    return %c0_i32, %c0_i32_0 : i32, i32
  }
  func.func @transform_5(%arg0: i32, %arg1: memref<2xi32, #tpu.memory_space<smem>>, %arg2: memref<2xi32, #tpu.memory_space<smem>>) -> (i32, i32) {
    %c0_i32 = arith.constant 0 : i32
    %c0_i32_0 = arith.constant 0 : i32
    %c0_i32_1 = arith.constant 0 : i32
    return %c0_i32, %c0_i32_0 : i32, i32
  }
  func.func @transform_6(%arg0: i32, %arg1: memref<2xi32, #tpu.memory_space<smem>>, %arg2: memref<2xi32, #tpu.memory_space<smem>>) -> (i32, i32, i32) {
    %c0_i32 = arith.constant 0 : i32
    %c0_i32_0 = arith.constant 0 : i32
    %c0_i32_1 = arith.constant 0 : i32
    return %arg0, %c0_i32, %c0_i32_0 : i32, i32, i32
  }
}

</mosaic_0001>

<llo_original>
// kernel: tpu_custom_call.1
$region0: #{tpu_custom_call.1}
  #allocation0 [shape = 'u32[]', space=smem, size = 0x4, offset = 0x4, fixed_abs, tag = 'smem constant byte address 0x4 - core index']
  #allocation1 [shape = 'u32[144,128]{1,0:T(1,128)}', space=vmem, size = 0x12000, scoped, tag = 'internal scratch']
  #allocation2 [shape = 's32[1]{0}', space=sflag, size = 0x4, scoped, tag = 'scoped memory for tpu_custom_call.1']
  #allocation3 [shape = 'u8[512]{0}', space=smem, size = 0x200, scoped, tag = 'prefetched SMEM operand 0']
  #allocation4 [shape = 'u8[512]{0}', space=smem, size = 0x200, scoped, tag = 'prefetched SMEM operand 1']
  #allocation5 [shape = 'f32[1,1]{1,0:T(1,128)S(1)}', space=vmem, size = 0x200, scoped, tag = 'scoped memory for tpu_custom_call.1']
  %s0 = inlined_call_operand.vmem [shape: s32[2], index: 0, kind: input, shape index: {}]
  %s1 = inlined_call_operand.vmem [shape: s32[2], index: 1, kind: input, shape index: {}]
  %s2 = inlined_call_operand.hbm [shape: f32[2,16,32], index: 2, kind: input, shape index: {}]
  %s3 = inlined_call_operand.hbm [shape: f32[2,8,32], index: 3, kind: input, shape index: {}]
  %s4 = inlined_call_operand.vmem [shape: f32[1,32], index: 4, kind: input, shape index: {}]
  %s5 = inlined_call_operand.vmem [shape: f32[1,32], index: 5, kind: input, shape index: {}]
  %s6 = inlined_call_operand.vmem [shape: f32[1,32], index: 6, kind: input, shape index: {}]
  %s7 = inlined_call_operand.<no memory space> [shape: f32[1,1], index: 7, kind: input, shape index: {}]
  %s8 = inlined_call_operand.hbm [shape: f32[2,16,128], index: 8, kind: output, shape index: {}]
  %s9 = sld [smem:[#allocation0]]
  $region42: #{tpu_custom_call.1} parent=0
    _
  %s11 = ssub.s32 1, %s9
  %s12 = scalar_select 0, %s11, %s9
  %s13 = sshll.u32 %s0, 4
  %s14 = int_to_ptr.vmem [resolvable:$true] %s13
  %16 = dma.vmem_to_smem %s14, 16, [#allocation3], [#allocation2]
  %s17 = sshll.u32 %s1, 4
  %s18 = int_to_ptr.vmem [resolvable:$true] %s17
  %20 = dma.vmem_to_smem %s18, 16, [#allocation4], [#allocation2]
  %v21 = vstv %s7
  %22 = vst [vmem:[#allocation5] sm:$0x1] %v21
  %23 = dma.done [#allocation2], 32
  %24 = sfence
  $region1: #{tpu_custom_call.1} parent=0
    #allocation6 [shape = 'u8[16384]{0}', space=vmem, size = 0x4000, scoped, tag = 'input window, operand 2, single buffered']
    #allocation7 [shape = 's32[1]{0}', space=sflag, size = 0x4, scoped, tag = 'scoped memory for tpu_custom_call.1']
    #allocation8 [shape = 's32[1]{0}', space=sflag, size = 0x4, scoped, tag = 'scoped memory for tpu_custom_call.1']
    #allocation9 [shape = 'u8[8192]{0}', space=vmem, size = 0x2000, scoped, tag = 'input window, operand 3, single buffered']
    #allocation10 [shape = 's32[1]{0}', space=sflag, size = 0x4, scoped, tag = 'scoped memory for tpu_custom_call.1']
    #allocation11 [shape = 'u8[16384]{0}', space=vmem, size = 0x4000, scoped, tag = 'output window, operand 0, single buffered']
    %25 = vsyncpa [#allocation7], 0
    %26 = vsyncpa [#allocation10], 0
    %27 = vsyncpa [#allocation8], 0
    // Predicated region
    $region2: #{tpu_custom_call.1} parent=1 // pred_check
      _
    $region3: #{tpu_custom_call.1} parent=1 // pred_check_branch
      %29 = sbr.rel (0) target = $region5
    $region4: #{tpu_custom_call.1} parent=1 // pred_region
      %s31 = ssub.s32 512, 512
      %32 = vsyncadd [#allocation7], %s31
      %s33 = sshll.u32 [#allocation6], 4
      %s34 = int_to_ptr.vmem [resolvable:$true] %s33
      %39 = dma.hbm_to_vmem [thread:$0]  %s2, 512, %s34, [#allocation7], 128, 128, 8
    $region5: #{tpu_custom_call.1} parent=1 // pred_fallthru
      _
    // Predicated region
    $region6: #{tpu_custom_call.1} parent=1 // pred_check
      _
    $region7: #{tpu_custom_call.1} parent=1 // pred_check_branch
      %41 = sbr.rel (0) target = $region9
    $region8: #{tpu_custom_call.1} parent=1 // pred_region
      %s43 = ssub.s32 256, 256
      %44 = vsyncadd [#allocation10], %s43
      %s45 = sshll.u32 [#allocation9], 4
      %s46 = int_to_ptr.vmem [resolvable:$true] %s45
      %51 = dma.hbm_to_vmem [thread:$0]  %s3, 256, %s46, [#allocation10], 128, 128, 8
    $region9: #{tpu_custom_call.1} parent=1 // pred_fallthru
      _
    // Predicated region
    $region10: #{tpu_custom_call.1} parent=1 // pred_check
      _
    $region11: #{tpu_custom_call.1} parent=1 // pred_check_branch
      %53 = sbr.rel (0) target = $region13
    $region12: #{tpu_custom_call.1} parent=1 // pred_region
      _
    $region13: #{tpu_custom_call.1} parent=1 // pred_fallthru
      _
    // Predicated region
    $region14: #{tpu_custom_call.1} parent=1 // pred_check
      _
    $region15: #{tpu_custom_call.1} parent=1 // pred_check_branch
      %55 = sbr.rel (0) target = $region17
    $region16: #{tpu_custom_call.1} parent=1 // pred_region
      _
    $region17: #{tpu_custom_call.1} parent=1 // pred_fallthru
      _
    // Predicated region
    $region18: #{tpu_custom_call.1} parent=1 // pred_check
      _
    $region19: #{tpu_custom_call.1} parent=1 // pred_check_branch
      %57 = sbr.rel (0) target = $region21
    $region20: #{tpu_custom_call.1} parent=1 // pred_region
      _
    $region21: #{tpu_custom_call.1} parent=1 // pred_fallthru
      _
    // Predicated region
    $region22: #{tpu_custom_call.1} parent=1 // pred_check
      _
    $region23: #{tpu_custom_call.1} parent=1 // pred_check_branch
      %59 = sbr.rel (0) target = $region25
    $region24: #{tpu_custom_call.1} parent=1 // pred_region
      _
    $region25: #{tpu_custom_call.1} parent=1 // pred_fallthru
      _
    // Predicated region
    $region26: #{tpu_custom_call.1} parent=1 // pred_check
      _
    $region27: #{tpu_custom_call.1} parent=1 // pred_check_branch
      %61 = sbr.rel (0) target = $region29
    $region28: #{tpu_custom_call.1} parent=1 // pred_region
      %62 = dma.done [#allocation7], 512
    $region29: #{tpu_custom_call.1} parent=1 // pred_fallthru
      _
    // Predicated region
    $region30: #{tpu_custom_call.1} parent=1 // pred_check
      _
    $region31: #{tpu_custom_call.1} parent=1 // pred_check_branch
      %64 = sbr.rel (0) target = $region33
    $region32: #{tpu_custom_call.1} parent=1 // pred_region
      %65 = dma.done [#allocation10], 256
    $region33: #{tpu_custom_call.1} parent=1 // pred_fallthru
      _
    %s66 = smul.u32 0, 2
    %v67 = vld [vmem:[#allocation6] sm:$0xff]
    %v68 = vld [vmem:[#allocation6 + $0x8] sm:$0xff]
    %v69 = vld [vmem:[#allocation6 + $0x10] sm:$0xff]
    %v70 = vld [vmem:[#allocation6 + $0x18] sm:$0xff]
    %v71 = vld [vmem:[#allocation9] sm:$0xff]
    %v72 = vld [vmem:[#allocation9 + $0x8] sm:$0xff]
    %v73 = vld [vmem:[%s4] sm:$0x1]
    %v74 = vld [vmem:[%s5] sm:$0x1]
    %v75 = vld [vmem:[%s6] sm:$0x1]
    %v76 = vld [vmem:[#allocation5] sm:$0x1]
    %v78 = vlaneseq
    %v79 = vshrl.u32 %v78, 7
    %v80 = vsub.s32 0, %v79
    %v81 = vrot.slane %v73, %v80
    %v83 = vmul.f32 %v67, %v81
    %v84 = vmul.f32 %v68, %v81
    %v85 = vmul.f32 %v69, %v81
    %v86 = vmul.f32 %v70, %v81
    %vm87 = vcmask 261120
    %v88 = vsel %vm87, %v83, 0.0
    %89 = vadd.xlane.f32.xlu0 %v88
    %v90 = vpop.xlane.xlu0 %89
    %v91 = vsel %vm87, %v84, 0.0
    %92 = vadd.xlane.f32.xlu0 %v91
    %v93 = vpop.xlane.xlu0 %92
    %v94 = vsel %vm87, %v85, 0.0
    %95 = vadd.xlane.f32.xlu0 %v94
    %v96 = vpop.xlane.xlu0 %95
    %v97 = vsel %vm87, %v86, 0.0
    %98 = vadd.xlane.f32.xlu0 %v97
    %v99 = vpop.xlane.xlu0 %98
    %v101 = vlaneseq
    %v102 = vshrl.u32 %v101, 7
    %v103 = vsub.s32 0, %v102
    %v104 = vrot.slane %v74, %v103
    %v106 = vmul.f32 %v71, %v104
    %v107 = vmul.f32 %v72, %v104
    %v108 = vsel %vm87, %v106, 0.0
    %109 = vadd.xlane.f32.xlu0 %v108
    %v110 = vpop.xlane.xlu0 %109
    %v111 = vsel %vm87, %v107, 0.0
    %112 = vadd.xlane.f32.xlu0 %v111
    %v113 = vpop.xlane.xlu0 %112
    %v115 = vlaneseq
    %v116 = vshrl.u32 %v115, 7
    %v117 = vsub.s32 0, %v116
    %v118 = vrot.slane %v75, %v117
    %v120 = vmul.f32 %v67, %v118
    %v121 = vmul.f32 %v68, %v118
    %v122 = vmul.f32 %v69, %v118
    %v123 = vmul.f32 %v70, %v118
    %v125 = vsel %vm87, %v120, 0
    %v128 = vsel %vm87, %v121, 0
    %v131 = vsel %vm87, %v71, 0
    %133 = vmatprep.subr.mxu0 0.0
    %134 = vmatpush1.xpose.msra.mxu0 0.0
    %135 = vmatprep.subr.mxu0 0.0
    %136 = vmatpush1.xpose.msra.mxu0 0.0
    %137 = vmatprep.subr.mxu0 0.0
    %138 = vmatpush1.xpose.msra.mxu0 0.0
    %139 = vmatprep.subr.mxu0 0.0
    %140 = vmatpush1.xpose.msra.mxu0 0.0
    %141 = vmatprep.subr.mxu0 0.0
    %142 = vmatpush1.xpose.msra.mxu0 0.0
    %143 = vmatprep.subr.mxu0 0.0
    %144 = vmatpush1.xpose.msra.mxu0 0.0
    %145 = vmatprep.subr.mxu0 0.0
    %146 = vmatpush1.xpose.msra.mxu0 0.0
    %147 = vmatprep.subr.mxu0 0.0
    %148 = vmatpush1.xpose.msra.mxu0 0.0
    %149 = vmatprep.subr.mxu0 0.0
    %150 = vmatpush1.xpose.msra.mxu0 0.0
    %151 = vmatprep.subr.mxu0 0.0
    %152 = vmatpush1.xpose.msra.mxu0 0.0
    %153 = vmatprep.subr.mxu0 0.0
    %154 = vmatpush1.xpose.msra.mxu0 0.0
    %155 = vmatprep.subr.mxu0 0.0
    %156 = vmatpush1.xpose.msra.mxu0 0.0
    %157 = vmatprep.subr.mxu0 0.0
    %158 = vmatpush1.xpose.msra.mxu0 0.0
    %159 = vmatprep.subr.mxu0 0.0
    %160 = vmatpush1.xpose.msra.mxu0 0.0
    %161 = vmatprep.subr.mxu0 0.0
    %162 = vmatpush1.xpose.msra.mxu0 0.0
    %163 = vmatprep.subr.mxu0 0.0
    %164 = vmatpush1.xpose.msra.mxu0 %v131
    %165 = vmatprep.subr.mxu0 0.0
    %166 = vmatpush2.xpose.msra.mxu0 0.0
    %167 = vmatprep.subr.mxu0 0.0
    %168 = vmatpush2.xpose.msra.mxu0 0.0
    %169 = vmatprep.subr.mxu0 0.0
    %170 = vmatpush2.xpose.msra.mxu0 0.0
    %171 = vmatprep.subr.mxu0 0.0
    %172 = vmatpush2.xpose.msra.mxu0 0.0
    %173 = vmatprep.subr.mxu0 0.0
    %174 = vmatpush2.xpose.msra.mxu0 0.0
    %175 = vmatprep.subr.mxu0 0.0
    %176 = vmatpush2.xpose.msra.mxu0 0.0
    %177 = vmatprep.subr.mxu0 0.0
    %178 = vmatpush2.xpose.msra.mxu0 0.0
    %179 = vmatprep.subr.mxu0 0.0
    %180 = vmatpush2.xpose.msra.mxu0 0.0
    %181 = vmatprep.subr.mxu0 0.0
    %182 = vmatpush2.xpose.msra.mxu0 0.0
    %183 = vmatprep.subr.mxu0 0.0
    %184 = vmatpush2.xpose.msra.mxu0 0.0
    %185 = vmatprep.subr.mxu0 0.0
    %186 = vmatpush2.xpose.msra.mxu0 0.0
    %187 = vmatprep.subr.mxu0 0.0
    %188 = vmatpush2.xpose.msra.mxu0 0.0
    %189 = vmatprep.subr.mxu0 0.0
    %190 = vmatpush2.xpose.msra.mxu0 0.0
    %191 = vmatprep.subr.mxu0 0.0
    %192 = vmatpush2.xpose.msra.mxu0 0.0
    %193 = vmatprep.subr.mxu0 0.0
    %194 = vmatpush2.xpose.msra.mxu0 0.0
    %195 = vmatprep.subr.mxu0 0.0
    %196 = vmatpush2.xpose.msra.mxu0 0.0
    %197 = vmatprep.mubr.f32.mxu0 0.0
    %198 = vmatmul.mubr.f32.gmra.mxu0 %v125
    %v199 = vpop.f32.mrf.mxu0
    %v200 = vadd.f32 %v90, %v199
    %v201 = vpop.f32.mrf.mxu0
    %202 = vmatprep.mubr.f32.mxu0 0.0
    %203 = vmatmul.mubr.f32.gmra.mxu0 %v128
    %v204 = vpop.f32.mrf.mxu0
    %v205 = vadd.f32 %v93, %v204
    %v206 = vpop.f32.mrf.mxu0
    %207 = vdwg.mxu0
    %v209 = vsel %vm87, %v122, 0
    %v212 = vsel %vm87, %v123, 0
    %v215 = vsel %vm87, %v72, 0
    %217 = vmatprep.subr.mxu0 0.0
    %218 = vmatpush1.xpose.msra.mxu0 0.0
    %219 = vmatprep.subr.mxu0 0.0
    %220 = vmatpush1.xpose.msra.mxu0 0.0
    %221 = vmatprep.subr.mxu0 0.0
    %222 = vmatpush1.xpose.msra.mxu0 0.0
    %223 = vmatprep.subr.mxu0 0.0
    %224 = vmatpush1.xpose.msra.mxu0 0.0
    %225 = vmatprep.subr.mxu0 0.0
    %226 = vmatpush1.xpose.msra.mxu0 0.0
    %227 = vmatprep.subr.mxu0 0.0
    %228 = vmatpush1.xpose.msra.mxu0 0.0
    %229 = vmatprep.subr.mxu0 0.0
    %230 = vmatpush1.xpose.msra.mxu0 0.0
    %231 = vmatprep.subr.mxu0 0.0
    %232 = vmatpush1.xpose.msra.mxu0 0.0
    %233 = vmatprep.subr.mxu0 0.0
    %234 = vmatpush1.xpose.msra.mxu0 0.0
    %235 = vmatprep.subr.mxu0 0.0
    %236 = vmatpush1.xpose.msra.mxu0 0.0
    %237 = vmatprep.subr.mxu0 0.0
    %238 = vmatpush1.xpose.msra.mxu0 0.0
    %239 = vmatprep.subr.mxu0 0.0
    %240 = vmatpush1.xpose.msra.mxu0 0.0
    %241 = vmatprep.subr.mxu0 0.0
    %242 = vmatpush1.xpose.msra.mxu0 0.0
    %243 = vmatprep.subr.mxu0 0.0
    %244 = vmatpush1.xpose.msra.mxu0 0.0
    %245 = vmatprep.subr.mxu0 0.0
    %246 = vmatpush1.xpose.msra.mxu0 0.0
    %247 = vmatprep.subr.mxu0 0.0
    %248 = vmatpush1.xpose.msra.mxu0 %v215
    %249 = vmatprep.subr.mxu0 0.0
    %250 = vmatpush2.xpose.msra.mxu0 0.0
    %251 = vmatprep.subr.mxu0 0.0
    %252 = vmatpush2.xpose.msra.mxu0 0.0
    %253 = vmatprep.subr.mxu0 0.0
    %254 = vmatpush2.xpose.msra.mxu0 0.0
    %255 = vmatprep.subr.mxu0 0.0
    %256 = vmatpush2.xpose.msra.mxu0 0.0
    %257 = vmatprep.subr.mxu0 0.0
    %258 = vmatpush2.xpose.msra.mxu0 0.0
    %259 = vmatprep.subr.mxu0 0.0
    %260 = vmatpush2.xpose.msra.mxu0 0.0
    %261 = vmatprep.subr.mxu0 0.0
    %262 = vmatpush2.xpose.msra.mxu0 0.0
    %263 = vmatprep.subr.mxu0 0.0
    %264 = vmatpush2.xpose.msra.mxu0 0.0
    %265 = vmatprep.subr.mxu0 0.0
    %266 = vmatpush2.xpose.msra.mxu0 0.0
    %267 = vmatprep.subr.mxu0 0.0
    %268 = vmatpush2.xpose.msra.mxu0 0.0
    %269 = vmatprep.subr.mxu0 0.0
    %270 = vmatpush2.xpose.msra.mxu0 0.0
    %271 = vmatprep.subr.mxu0 0.0
    %272 = vmatpush2.xpose.msra.mxu0 0.0
    %273 = vmatprep.subr.mxu0 0.0
    %274 = vmatpush2.xpose.msra.mxu0 0.0
    %275 = vmatprep.subr.mxu0 0.0
    %276 = vmatpush2.xpose.msra.mxu0 0.0
    %277 = vmatprep.subr.mxu0 0.0
    %278 = vmatpush2.xpose.msra.mxu0 0.0
    %279 = vmatprep.subr.mxu0 0.0
    %280 = vmatpush2.xpose.msra.mxu0 0.0
    %281 = vmatprep.mubr.f32.mxu0 0.0
    %282 = vmatmul.mubr.f32.gmra.mxu0 %v209
    %v283 = vpop.f32.mrf.mxu0
    %v284 = vadd.f32 %v96, %v283
    %v285 = vpop.f32.mrf.mxu0
    %286 = vmatprep.mubr.f32.mxu0 0.0
    %287 = vmatmul.mubr.f32.gmra.mxu0 %v212
    %v288 = vpop.f32.mrf.mxu0
    %v289 = vadd.f32 %v99, %v288
    %v290 = vpop.f32.mrf.mxu0
    %291 = vdwg.mxu0
    %v294 = vlaneseq
    %v295 = vand.u32 %v294, 127
    %v296 = vlaneseq
    %v297 = vshrl.u32 %v296, 7
    %v298 = vsub.s32 %v295, %v297
    %v299 = vrot.slane %v110, %v298
    %v300 = vlaneseq
    %v301 = vshrl.u32 %v300, 7
    %v302 = vsub.s32 %v295, %v301
    %v303 = vrot.slane %v113, %v302
    %vm304 = vcmask 1042434
    %v305 = vsel %vm304, %v299, %v299
    %vm306 = vcmask 1043459
    %v307 = vsel %vm306, %v299, %v305
    %vm308 = vcmask 1044484
    %v309 = vsel %vm308, %v299, %v307
    %vm310 = vcmask 1045509
    %v311 = vsel %vm310, %v299, %v309
    %vm312 = vcmask 1046534
    %v313 = vsel %vm312, %v299, %v311
    %vm314 = vcmask 1047559
    %v315 = vsel %vm314, %v299, %v313
    %v316 = vsel %vm304, %v303, %v303
    %v317 = vsel %vm306, %v303, %v316
    %v318 = vsel %vm308, %v303, %v317
    %v319 = vsel %vm310, %v303, %v318
    %v320 = vsel %vm312, %v303, %v319
    %v321 = vsel %vm314, %v303, %v320
    %v324 = vadd.f32 %v200, %v315
    %v325 = vadd.f32 %v205, %v315
    %v326 = vadd.f32 %v284, %v321
    %v327 = vadd.f32 %v289, %v321
    %v329 = vlaneseq
    %v330 = vshrl.u32 %v329, 7
    %v331 = vsub.s32 0, %v330
    %v332 = vrot.slane %v76, %v331
    %333 = vset.pattern.permute.xlu0 0
    %334 = vperm.xlu0 %333, %v332
    %v335 = vpop.permute.xlu0 %334
    %v337 = vadd.f32 %v324, %v335
    %v338 = vadd.f32 %v325, %v335
    %v339 = vadd.f32 %v326, %v335
    %v340 = vadd.f32 %v327, %v335
    %s341 = sld [smem:[#allocation3 + %s66]]
    %v342 = vstv %s341
    %s343 = sadd.s32 %s66, 1
    %s344 = sld [smem:[#allocation3 + %s343]]
    %v345 = vstv %s344
    %vm346 = vcmask 1040384
    %v347 = vsel %vm346, %v342, %v345
    %s348 = sld [smem:[#allocation4 + %s66]]
    %v349 = vstv %s348
    %s350 = sld [smem:[#allocation4 + %s343]]
    %v351 = vstv %s350
    %v352 = vsel %vm346, %v349, %v351
    %v354 = vunpack.c.l.s4 1966171168
    %v355 = vunpack.c.0.s8 %v354
    %v356 = vlaneseq
    %v357 = vshrl.u32 %v356, 7
    %v358 = vsub.s32 %v355, %v357
    %v359 = vrot.slane %v352, %v358
    %v360 = vcombine.high %v359, %v359
    %v362 = vunpack.c.l.s4 1966171168
    %v363 = vunpack.c.0.s8 %v362
    %v364 = vlaneseq
    %v365 = vshrl.u32 %v364, 7
    %v366 = vsub.s32 %v363, %v365
    %v367 = vrot.slane %v359, %v366
    %v369 = vunpack.c.l.s4 1966171168
    %v370 = vunpack.c.0.s8 %v369
    %v371 = vlaneseq
    %v372 = vshrl.u32 %v371, 7
    %v373 = vsub.s32 %v370, %v372
    %v374 = vrot.slane %v360, %v373
    %375 = vset.pattern.permute.xlu0 0
    %376 = vperm.xlu0 %375, %v367
    %v377 = vpop.permute.xlu0 %376
    %v378 = vlaneseq
    %v379 = vshrl.u32 %v378, 7
    %v380 = vsub.s32 0, %v379
    %v381 = vrot.slane %v377, %v380
    %382 = vset.pattern.permute.xlu0 0
    %383 = vperm.xlu0 %382, %v374
    %v384 = vpop.permute.xlu0 %383
    %v385 = vlaneseq
    %v386 = vshrl.u32 %v385, 7
    %v387 = vsub.s32 0, %v386
    %v388 = vrot.slane %v384, %v387
    %vm389 = vcmp.lt.s32.totalorder %v295, %v381
    %vm390 = vcmp.lt.s32.totalorder %v295, %v388
    %v391 = vlaneseq
    %v392 = vshrl.u32 %v391, 7
    %v393 = vadd.s32 %v392, 8
    %v395 = vunpack.c.l.s4 1966171168
    %v396 = vunpack.c.0.s8 %v395
    %v397 = vlaneseq
    %v398 = vshrl.u32 %v397, 7
    %v399 = vsub.s32 %v396, %v398
    %v400 = vrot.slane %v347, %v399
    %v401 = vcombine.high %v400, %v400
    %v403 = vunpack.c.l.s4 1966171168
    %v404 = vunpack.c.0.s8 %v403
    %v405 = vlaneseq
    %v406 = vshrl.u32 %v405, 7
    %v407 = vsub.s32 %v404, %v406
    %v408 = vrot.slane %v400, %v407
    %v410 = vunpack.c.l.s4 1966171168
    %v411 = vunpack.c.0.s8 %v410
    %v412 = vlaneseq
    %v413 = vshrl.u32 %v412, 7
    %v414 = vsub.s32 %v411, %v413
    %v415 = vrot.slane %v401, %v414
    %v416 = vlaneseq
    %v417 = vshrl.u32 %v416, 7
    %v418 = vsub.s32 0, %v417
    %v419 = vrot.slane %v408, %v418
    %v420 = vlaneseq
    %v421 = vshrl.u32 %v420, 7
    %v422 = vsub.s32 0, %v421
    %v423 = vrot.slane %v415, %v422
    %vm424 = vcmp.lt.s32.totalorder %v392, %v419
    %vm425 = vcmp.lt.s32.totalorder %v393, %v419
    %vm426 = vcmp.lt.s32.totalorder %v392, %v423
    %vm427 = vcmp.lt.s32.totalorder %v393, %v423
    %v428 = vsel %vm389, 1, 0
    %v429 = vsel %vm390, 1, 0
    %vm430 = vcmp.eq.s32.totalorder %v428, 1
    %vm431 = vcmp.eq.s32.totalorder %v429, 1
    %v432 = vsel %vm430, %v337, -1e+30
    %v433 = vsel %vm430, %v338, -1e+30
    %v434 = vsel %vm431, %v339, -1e+30
    %v435 = vsel %vm431, %v340, -1e+30
    %vm436 = vcmask 64512
    %v437 = vsel %vm436, %v432, -inf
    %438 = vmax.xlane.f32.xlu0 %v437
    %v439 = vpop.xlane.xlu0 %438
    %v440 = vsel %vm436, %v433, -inf
    %441 = vmax.xlane.f32.xlu0 %v440
    %v442 = vpop.xlane.xlu0 %441
    %v443 = vsel %vm436, %v434, -inf
    %444 = vmax.xlane.f32.xlu0 %v443
    %v445 = vpop.xlane.xlu0 %444
    %v446 = vsel %vm436, %v435, -inf
    %447 = vmax.xlane.f32.xlu0 %v446
    %v448 = vpop.xlane.xlu0 %447
    %v449 = vsub.f32 %v432, %v439
    %v450 = vsub.f32 %v433, %v442
    %v451 = vsub.f32 %v434, %v445
    %v452 = vsub.f32 %v435, %v448
    %v453 = vmul.f32 %v449, 1.442695
    %v454 = vpow.pop %v453
    %v455 = vmul.f32 %v450, 1.442695
    %v456 = vpow.pop %v455
    %v457 = vmul.f32 %v451, 1.442695
    %v458 = vpow.pop %v457
    %v459 = vmul.f32 %v452, 1.442695
    %v460 = vpow.pop %v459
    %v461 = vsel %vm436, %v454, 0.0
    %462 = vadd.xlane.f32.xlu0 %v461
    %v463 = vpop.xlane.xlu0 %462
    %v464 = vsel %vm436, %v456, 0.0
    %465 = vadd.xlane.f32.xlu0 %v464
    %v466 = vpop.xlane.xlu0 %465
    %v467 = vsel %vm436, %v458, 0.0
    %468 = vadd.xlane.f32.xlu0 %v467
    %v469 = vpop.xlane.xlu0 %468
    %v470 = vsel %vm436, %v460, 0.0
    %471 = vadd.xlane.f32.xlu0 %v470
    %v472 = vpop.xlane.xlu0 %471
    %v473 = vrcp.pop %v463
    %v474 = vrcp.pop %v466
    %v475 = vrcp.pop %v469
    %v476 = vrcp.pop %v472
    %v477 = vmul.f32 %v454, %v473
    %v478 = vmul.f32 %v456, %v474
    %v479 = vmul.f32 %v458, %v475
    %v480 = vmul.f32 %v460, %v476
    %v481 = vsel %vm424, 1, 0
    %v482 = vsel %vm425, 1, 0
    %v483 = vsel %vm426, 1, 0
    %v484 = vsel %vm427, 1, 0
    %485 = vset.pattern.permute.xlu0 0
    %486 = vperm.xlu0 %485, %v481
    %v487 = vpop.permute.xlu0 %486
    %488 = vset.pattern.permute.xlu0 0
    %489 = vperm.xlu0 %488, %v482
    %v490 = vpop.permute.xlu0 %489
    %491 = vset.pattern.permute.xlu0 0
    %492 = vperm.xlu0 %491, %v483
    %v493 = vpop.permute.xlu0 %492
    %494 = vset.pattern.permute.xlu0 0
    %495 = vperm.xlu0 %494, %v484
    %v496 = vpop.permute.xlu0 %495
    %vm497 = vcmp.eq.s32.totalorder %v487, 1
    %vm498 = vcmp.eq.s32.totalorder %v490, 1
    %vm499 = vcmp.eq.s32.totalorder %v493, 1
    %vm500 = vcmp.eq.s32.totalorder %v496, 1
    %v501 = vsel %vm497, %v337, -1e+30
    %v502 = vsel %vm498, %v338, -1e+30
    %v503 = vsel %vm499, %v339, -1e+30
    %v504 = vsel %vm500, %v340, -1e+30
    %v505 = vsel %vm436, %v501, -inf
    %v506 = vsel %vm436, %v502, -inf
    %v507 = vmax.f32 %v505, %v506
    %v508 = vrot.slane %v507, 4
    %v509 = vmax.f32 %v507, %v508
    %v510 = vrot.slane %v509, 2
    %v511 = vmax.f32 %v509, %v510
    %v512 = vrot.slane %v511, 1
    %v513 = vmax.f32 %v511, %v512
    %v514 = vsel %vm436, %v503, -inf
    %v515 = vsel %vm436, %v504, -inf
    %v516 = vmax.f32 %v514, %v515
    %v517 = vrot.slane %v516, 4
    %v518 = vmax.f32 %v516, %v517
    %v519 = vrot.slane %v518, 2
    %v520 = vmax.f32 %v518, %v519
    %v521 = vrot.slane %v520, 1
    %v522 = vmax.f32 %v520, %v521
    %v523 = vsub.f32 %v501, %v513
    %v524 = vsub.f32 %v502, %v513
    %v525 = vsub.f32 %v503, %v522
    %v526 = vsub.f32 %v504, %v522
    %v527 = vmul.f32 %v523, 1.442695
    %v528 = vpow.pop %v527
    %v529 = vmul.f32 %v524, 1.442695
    %v530 = vpow.pop %v529
    %v531 = vmul.f32 %v525, 1.442695
    %v532 = vpow.pop %v531
    %v533 = vmul.f32 %v526, 1.442695
    %v534 = vpow.pop %v533
    %v535 = vsel %vm436, %v528, 0.0
    %v536 = vsel %vm436, %v530, 0.0
    %v537 = vadd.f32 %v535, %v536
    %v538 = vrot.slane %v537, 4
    %v539 = vadd.f32 %v537, %v538
    %v540 = vrot.slane %v539, 2
    %v541 = vadd.f32 %v539, %v540
    %v542 = vrot.slane %v541, 1
    %v543 = vadd.f32 %v541, %v542
    %v544 = vsel %vm436, %v532, 0.0
    %v545 = vsel %vm436, %v534, 0.0
    %v546 = vadd.f32 %v544, %v545
    %v547 = vrot.slane %v546, 4
    %v548 = vadd.f32 %v546, %v547
    %v549 = vrot.slane %v548, 2
    %v550 = vadd.f32 %v548, %v549
    %v551 = vrot.slane %v550, 1
    %v552 = vadd.f32 %v550, %v551
    %v553 = vrcp.pop %v543
    %v554 = vrcp.pop %v552
    %v555 = vmul.f32 %v528, %v553
    %v556 = vmul.f32 %v530, %v553
    %v557 = vmul.f32 %v532, %v554
    %v558 = vmul.f32 %v534, %v554
    %559 = vxpose.xlu0.b32.start [1/16] %v555, 128
    %560 = vxpose.xlu0.b32.cont [2/16] %v556, 128
    %561 = vxpose.xlu0.b32.cont [3/16] 0.0, 128
    %562 = vxpose.xlu0.b32.cont [4/16] 0.0, 128
    %563 = vxpose.xlu0.b32.cont [5/16] 0.0, 128
    %564 = vxpose.xlu0.b32.cont [6/16] 0.0, 128
    %565 = vxpose.xlu0.b32.cont [7/16] 0.0, 128
    %566 = vxpose.xlu0.b32.cont [8/16] 0.0, 128
    %567 = vxpose.xlu0.b32.cont [9/16] 0.0, 128
    %568 = vxpose.xlu0.b32.cont [10/16] 0.0, 128
    %569 = vxpose.xlu0.b32.cont [11/16] 0.0, 128
    %570 = vxpose.xlu0.b32.cont [12/16] 0.0, 128
    %571 = vxpose.xlu0.b32.cont [13/16] 0.0, 128
    %572 = vxpose.xlu0.b32.cont [14/16] 0.0, 128
    %573 = vxpose.xlu0.b32.cont [15/16] 0.0, 128
    %574 = vxpose.xlu0.b32.end [16/16] 0.0, 128
    %v575 = vpop.trf.xlu0
    %v576 = vpop.trf.xlu0
    %v577 = vpop.trf.xlu0
    %v578 = vpop.trf.xlu0
    %v579 = vpop.trf.xlu0
    %v580 = vpop.trf.xlu0
    %v581 = vpop.trf.xlu0
    %v582 = vpop.trf.xlu0
    %v583 = vpop.trf.xlu0
    %v584 = vpop.trf.xlu0
    %v585 = vpop.trf.xlu0
    %v586 = vpop.trf.xlu0
    %v587 = vpop.trf.xlu0
    %v588 = vpop.trf.xlu0
    %v589 = vpop.trf.xlu0
    %v590 = vpop.trf.xlu0
    %vm591 = vcmask 130048
    %v593 = vsel %vm591, %v575, 0
    %595 = vmatprep.subr.mxu0 0.0
    %596 = vmatpush1.msra.mxu0 0.0
    %597 = vmatprep.subr.mxu0 0.0
    %598 = vmatpush1.msra.mxu0 0.0
    %599 = vmatprep.subr.mxu0 0.0
    %600 = vmatpush1.msra.mxu0 0.0
    %601 = vmatprep.subr.mxu0 0.0
    %602 = vmatpush1.msra.mxu0 0.0
    %603 = vmatprep.subr.mxu0 0.0
    %604 = vmatpush1.msra.mxu0 0.0
    %605 = vmatprep.subr.mxu0 0.0
    %606 = vmatpush1.msra.mxu0 0.0
    %607 = vmatprep.subr.mxu0 0.0
    %608 = vmatpush1.msra.mxu0 0.0
    %609 = vmatprep.subr.mxu0 0.0
    %610 = vmatpush1.msra.mxu0 0.0
    %611 = vmatprep.subr.mxu0 0.0
    %612 = vmatpush1.msra.mxu0 0.0
    %613 = vmatprep.subr.mxu0 0.0
    %614 = vmatpush1.msra.mxu0 0.0
    %615 = vmatprep.subr.mxu0 0.0
    %616 = vmatpush1.msra.mxu0 0.0
    %617 = vmatprep.subr.mxu0 0.0
    %618 = vmatpush1.msra.mxu0 0.0
    %619 = vmatprep.subr.mxu0 0.0
    %620 = vmatpush1.msra.mxu0 0.0
    %621 = vmatprep.subr.mxu0 0.0
    %622 = vmatpush1.msra.mxu0 0.0
    %623 = vmatprep.subr.mxu0 0.0
    %624 = vmatpush1.msra.mxu0 %v68
    %625 = vmatprep.subr.mxu0 0.0
    %626 = vmatpush1.msra.mxu0 %v67
    %627 = vmatprep.subr.mxu0 0.0
    %628 = vmatpush2.msra.mxu0 0.0
    %629 = vmatprep.subr.mxu0 0.0
    %630 = vmatpush2.msra.mxu0 0.0
    %631 = vmatprep.subr.mxu0 0.0
    %632 = vmatpush2.msra.mxu0 0.0
    %633 = vmatprep.subr.mxu0 0.0
    %634 = vmatpush2.msra.mxu0 0.0
    %635 = vmatprep.subr.mxu0 0.0
    %636 = vmatpush2.msra.mxu0 0.0
    %637 = vmatprep.subr.mxu0 0.0
    %638 = vmatpush2.msra.mxu0 0.0
    %639 = vmatprep.subr.mxu0 0.0
    %640 = vmatpush2.msra.mxu0 0.0
    %641 = vmatprep.subr.mxu0 0.0
    %642 = vmatpush2.msra.mxu0 0.0
    %643 = vmatprep.subr.mxu0 0.0
    %644 = vmatpush2.msra.mxu0 0.0
    %645 = vmatprep.subr.mxu0 0.0
    %646 = vmatpush2.msra.mxu0 0.0
    %647 = vmatprep.subr.mxu0 0.0
    %648 = vmatpush2.msra.mxu0 0.0
    %649 = vmatprep.subr.mxu0 0.0
    %650 = vmatpush2.msra.mxu0 0.0
    %651 = vmatprep.subr.mxu0 0.0
    %652 = vmatpush2.msra.mxu0 0.0
    %653 = vmatprep.subr.mxu0 0.0
    %654 = vmatpush2.msra.mxu0 0.0
    %655 = vmatprep.subr.mxu0 0.0
    %656 = vmatpush2.msra.mxu0 0.0
    %657 = vmatprep.subr.mxu0 0.0
    %658 = vmatpush2.msra.mxu0 0.0
    %659 = vmatprep.mubr.f32.mxu0 0.0
    %660 = vmatmul.mubr.f32.gmra.mxu0 %v593
    %v661 = vpop.f32.mrf.mxu0
    %v662 = vadd.f32 0.0, %v661
    %v663 = vpop.f32.mrf.mxu0
    %664 = vdwg.mxu0
    %665 = vxpose.xlu0.b32.start [1/16] %v557, 128
    %666 = vxpose.xlu0.b32.cont [2/16] %v558, 128
    %667 = vxpose.xlu0.b32.cont [3/16] 0.0, 128
    %668 = vxpose.xlu0.b32.cont [4/16] 0.0, 128
    %669 = vxpose.xlu0.b32.cont [5/16] 0.0, 128
    %670 = vxpose.xlu0.b32.cont [6/16] 0.0, 128
    %671 = vxpose.xlu0.b32.cont [7/16] 0.0, 128
    %672 = vxpose.xlu0.b32.cont [8/16] 0.0, 128
    %673 = vxpose.xlu0.b32.cont [9/16] 0.0, 128
    %674 = vxpose.xlu0.b32.cont [10/16] 0.0, 128
    %675 = vxpose.xlu0.b32.cont [11/16] 0.0, 128
    %676 = vxpose.xlu0.b32.cont [12/16] 0.0, 128
    %677 = vxpose.xlu0.b32.cont [13/16] 0.0, 128
    %678 = vxpose.xlu0.b32.cont [14/16] 0.0, 128
    %679 = vxpose.xlu0.b32.cont [15/16] 0.0, 128
    %680 = vxpose.xlu0.b32.end [16/16] 0.0, 128
    %v681 = vpop.trf.xlu0
    %v682 = vpop.trf.xlu0
    %v683 = vpop.trf.xlu0
    %v684 = vpop.trf.xlu0
    %v685 = vpop.trf.xlu0
    %v686 = vpop.trf.xlu0
    %v687 = vpop.trf.xlu0
    %v688 = vpop.trf.xlu0
    %v689 = vpop.trf.xlu0
    %v690 = vpop.trf.xlu0
    %v691 = vpop.trf.xlu0
    %v692 = vpop.trf.xlu0
    %v693 = vpop.trf.xlu0
    %v694 = vpop.trf.xlu0
    %v695 = vpop.trf.xlu0
    %v696 = vpop.trf.xlu0
    %v698 = vsel %vm591, %v681, 0
    %700 = vmatprep.subr.mxu0 0.0
    %701 = vmatpush1.msra.mxu0 0.0
    %702 = vmatprep.subr.mxu0 0.0
    %703 = vmatpush1.msra.mxu0 0.0
    %704 = vmatprep.subr.mxu0 0.0
    %705 = vmatpush1.msra.mxu0 0.0
    %706 = vmatprep.subr.mxu0 0.0
    %707 = vmatpush1.msra.mxu0 0.0
    %708 = vmatprep.subr.mxu0 0.0
    %709 = vmatpush1.msra.mxu0 0.0
    %710 = vmatprep.subr.mxu0 0.0
    %711 = vmatpush1.msra.mxu0 0.0
    %712 = vmatprep.subr.mxu0 0.0
    %713 = vmatpush1.msra.mxu0 0.0
    %714 = vmatprep.subr.mxu0 0.0
    %715 = vmatpush1.msra.mxu0 0.0
    %716 = vmatprep.subr.mxu0 0.0
    %717 = vmatpush1.msra.mxu0 0.0
    %718 = vmatprep.subr.mxu0 0.0
    %719 = vmatpush1.msra.mxu0 0.0
    %720 = vmatprep.subr.mxu0 0.0
    %721 = vmatpush1.msra.mxu0 0.0
    %722 = vmatprep.subr.mxu0 0.0
    %723 = vmatpush1.msra.mxu0 0.0
    %724 = vmatprep.subr.mxu0 0.0
    %725 = vmatpush1.msra.mxu0 0.0
    %726 = vmatprep.subr.mxu0 0.0
    %727 = vmatpush1.msra.mxu0 0.0
    %728 = vmatprep.subr.mxu0 0.0
    %729 = vmatpush1.msra.mxu0 %v70
    %730 = vmatprep.subr.mxu0 0.0
    %731 = vmatpush1.msra.mxu0 %v69
    %732 = vmatprep.subr.mxu0 0.0
    %733 = vmatpush2.msra.mxu0 0.0
    %734 = vmatprep.subr.mxu0 0.0
    %735 = vmatpush2.msra.mxu0 0.0
    %736 = vmatprep.subr.mxu0 0.0
    %737 = vmatpush2.msra.mxu0 0.0
    %738 = vmatprep.subr.mxu0 0.0
    %739 = vmatpush2.msra.mxu0 0.0
    %740 = vmatprep.subr.mxu0 0.0
    %741 = vmatpush2.msra.mxu0 0.0
    %742 = vmatprep.subr.mxu0 0.0
    %743 = vmatpush2.msra.mxu0 0.0
    %744 = vmatprep.subr.mxu0 0.0
    %745 = vmatpush2.msra.mxu0 0.0
    %746 = vmatprep.subr.mxu0 0.0
    %747 = vmatpush2.msra.mxu0 0.0
    %748 = vmatprep.subr.mxu0 0.0
    %749 = vmatpush2.msra.mxu0 0.0
    %750 = vmatprep.subr.mxu0 0.0
    %751 = vmatpush2.msra.mxu0 0.0
    %752 = vmatprep.subr.mxu0 0.0
    %753 = vmatpush2.msra.mxu0 0.0
    %754 = vmatprep.subr.mxu0 0.0
    %755 = vmatpush2.msra.mxu0 0.0
    %756 = vmatprep.subr.mxu0 0.0
    %757 = vmatpush2.msra.mxu0 0.0
    %758 = vmatprep.subr.mxu0 0.0
    %759 = vmatpush2.msra.mxu0 0.0
    %760 = vmatprep.subr.mxu0 0.0
    %761 = vmatpush2.msra.mxu0 0.0
    %762 = vmatprep.subr.mxu0 0.0
    %763 = vmatpush2.msra.mxu0 0.0
    %764 = vmatprep.mubr.f32.mxu0 0.0
    %765 = vmatmul.mubr.f32.gmra.mxu0 %v698
    %v766 = vpop.f32.mrf.mxu0
    %v767 = vadd.f32 0.0, %v766
    %v768 = vpop.f32.mrf.mxu0
    %769 = vdwg.mxu0
    %772 = vrot.lane.b32.xlu0 %v662, 32
    %v773 = vpop.permute.xlu0 %772
    %774 = vrot.lane.b32.xlu0 %v767, 32
    %v775 = vpop.permute.xlu0 %774
    %v778 = vsel %vm87, %v71, %v773
    %v779 = vsel %vm87, %v72, %v775
    %v781 = vsel %vm436, %v477, 0
    %v784 = vsel %vm436, %v478, 0
    %786 = vmatprep.subr.mxu0 0.0
    %787 = vmatpush1.msra.mxu0 0.0
    %788 = vmatprep.subr.mxu0 0.0
    %789 = vmatpush1.msra.mxu0 0.0
    %790 = vmatprep.subr.mxu0 0.0
    %791 = vmatpush1.msra.mxu0 0.0
    %792 = vmatprep.subr.mxu0 0.0
    %793 = vmatpush1.msra.mxu0 0.0
    %794 = vmatprep.subr.mxu0 0.0
    %795 = vmatpush1.msra.mxu0 0.0
    %796 = vmatprep.subr.mxu0 0.0
    %797 = vmatpush1.msra.mxu0 0.0
    %798 = vmatprep.subr.mxu0 0.0
    %799 = vmatpush1.msra.mxu0 0.0
    %800 = vmatprep.subr.mxu0 0.0
    %801 = vmatpush1.msra.mxu0 0.0
    %802 = vmatprep.subr.mxu0 0.0
    %803 = vmatpush1.msra.mxu0 0.0
    %804 = vmatprep.subr.mxu0 0.0
    %805 = vmatpush1.msra.mxu0 0.0
    %806 = vmatprep.subr.mxu0 0.0
    %807 = vmatpush1.msra.mxu0 0.0
    %808 = vmatprep.subr.mxu0 0.0
    %809 = vmatpush1.msra.mxu0 0.0
    %810 = vmatprep.subr.mxu0 0.0
    %811 = vmatpush1.msra.mxu0 0.0
    %812 = vmatprep.subr.mxu0 0.0
    %813 = vmatpush1.msra.mxu0 0.0
    %814 = vmatprep.subr.mxu0 0.0
    %815 = vmatpush1.msra.mxu0 0.0
    %816 = vmatprep.subr.mxu0 0.0
    %817 = vmatpush1.msra.mxu0 %v778
    %818 = vmatprep.subr.mxu0 0.0
    %819 = vmatpush2.msra.mxu0 0.0
    %820 = vmatprep.subr.mxu0 0.0
    %821 = vmatpush2.msra.mxu0 0.0
    %822 = vmatprep.subr.mxu0 0.0
    %823 = vmatpush2.msra.mxu0 0.0
    %824 = vmatprep.subr.mxu0 0.0
    %825 = vmatpush2.msra.mxu0 0.0
    %826 = vmatprep.subr.mxu0 0.0
    %827 = vmatpush2.msra.mxu0 0.0
    %828 = vmatprep.subr.mxu0 0.0
    %829 = vmatpush2.msra.mxu0 0.0
    %830 = vmatprep.subr.mxu0 0.0
    %831 = vmatpush2.msra.mxu0 0.0
    %832 = vmatprep.subr.mxu0 0.0
    %833 = vmatpush2.msra.mxu0 0.0
    %834 = vmatprep.subr.mxu0 0.0
    %835 = vmatpush2.msra.mxu0 0.0
    %836 = vmatprep.subr.mxu0 0.0
    %837 = vmatpush2.msra.mxu0 0.0
    %838 = vmatprep.subr.mxu0 0.0
    %839 = vmatpush2.msra.mxu0 0.0
    %840 = vmatprep.subr.mxu0 0.0
    %841 = vmatpush2.msra.mxu0 0.0
    %842 = vmatprep.subr.mxu0 0.0
    %843 = vmatpush2.msra.mxu0 0.0
    %844 = vmatprep.subr.mxu0 0.0
    %845 = vmatpush2.msra.mxu0 0.0
    %846 = vmatprep.subr.mxu0 0.0
    %847 = vmatpush2.msra.mxu0 0.0
    %848 = vmatprep.subr.mxu0 0.0
    %849 = vmatpush2.msra.mxu0 0.0
    %850 = vmatprep.mubr.f32.mxu0 0.0
    %851 = vmatmul.mubr.f32.gmra.mxu0 %v781
    %v852 = vpop.f32.mrf.mxu0
    %v853 = vadd.f32 0.0, %v852
    %v854 = vpop.f32.mrf.mxu0
    %855 = vmatprep.mubr.f32.mxu0 0.0
    %856 = vmatmul.mubr.f32.gmra.mxu0 %v784
    %v857 = vpop.f32.mrf.mxu0
    %v858 = vadd.f32 0.0, %v857
    %v859 = vpop.f32.mrf.mxu0
    %860 = vdwg.mxu0
    %v862 = vsel %vm436, %v479, 0
    %v865 = vsel %vm436, %v480, 0
    %867 = vmatprep.subr.mxu0 0.0
    %868 = vmatpush1.msra.mxu0 0.0
    %869 = vmatprep.subr.mxu0 0.0
    %870 = vmatpush1.msra.mxu0 0.0
    %871 = vmatprep.subr.mxu0 0.0
    %872 = vmatpush1.msra.mxu0 0.0
    %873 = vmatprep.subr.mxu0 0.0
    %874 = vmatpush1.msra.mxu0 0.0
    %875 = vmatprep.subr.mxu0 0.0
    %876 = vmatpush1.msra.mxu0 0.0
    %877 = vmatprep.subr.mxu0 0.0
    %878 = vmatpush1.msra.mxu0 0.0
    %879 = vmatprep.subr.mxu0 0.0
    %880 = vmatpush1.msra.mxu0 0.0
    %881 = vmatprep.subr.mxu0 0.0
    %882 = vmatpush1.msra.mxu0 0.0
    %883 = vmatprep.subr.mxu0 0.0
    %884 = vmatpush1.msra.mxu0 0.0
    %885 = vmatprep.subr.mxu0 0.0
    %886 = vmatpush1.msra.mxu0 0.0
    %887 = vmatprep.subr.mxu0 0.0
    %888 = vmatpush1.msra.mxu0 0.0
    %889 = vmatprep.subr.mxu0 0.0
    %890 = vmatpush1.msra.mxu0 0.0
    %891 = vmatprep.subr.mxu0 0.0
    %892 = vmatpush1.msra.mxu0 0.0
    %893 = vmatprep.subr.mxu0 0.0
    %894 = vmatpush1.msra.mxu0 0.0
    %895 = vmatprep.subr.mxu0 0.0
    %896 = vmatpush1.msra.mxu0 0.0
    %897 = vmatprep.subr.mxu0 0.0
    %898 = vmatpush1.msra.mxu0 %v779
    %899 = vmatprep.subr.mxu0 0.0
    %900 = vmatpush2.msra.mxu0 0.0
    %901 = vmatprep.subr.mxu0 0.0
    %902 = vmatpush2.msra.mxu0 0.0
    %903 = vmatprep.subr.mxu0 0.0
    %904 = vmatpush2.msra.mxu0 0.0
    %905 = vmatprep.subr.mxu0 0.0
    %906 = vmatpush2.msra.mxu0 0.0
    %907 = vmatprep.subr.mxu0 0.0
    %908 = vmatpush2.msra.mxu0 0.0
    %909 = vmatprep.subr.mxu0 0.0
    %910 = vmatpush2.msra.mxu0 0.0
    %911 = vmatprep.subr.mxu0 0.0
    %912 = vmatpush2.msra.mxu0 0.0
    %913 = vmatprep.subr.mxu0 0.0
    %914 = vmatpush2.msra.mxu0 0.0
    %915 = vmatprep.subr.mxu0 0.0
    %916 = vmatpush2.msra.mxu0 0.0
    %917 = vmatprep.subr.mxu0 0.0
    %918 = vmatpush2.msra.mxu0 0.0
    %919 = vmatprep.subr.mxu0 0.0
    %920 = vmatpush2.msra.mxu0 0.0
    %921 = vmatprep.subr.mxu0 0.0
    %922 = vmatpush2.msra.mxu0 0.0
    %923 = vmatprep.subr.mxu0 0.0
    %924 = vmatpush2.msra.mxu0 0.0
    %925 = vmatprep.subr.mxu0 0.0
    %926 = vmatpush2.msra.mxu0 0.0
    %927 = vmatprep.subr.mxu0 0.0
    %928 = vmatpush2.msra.mxu0 0.0
    %929 = vmatprep.subr.mxu0 0.0
    %930 = vmatpush2.msra.mxu0 0.0
    %931 = vmatprep.mubr.f32.mxu0 0.0
    %932 = vmatmul.mubr.f32.gmra.mxu0 %v862
    %v933 = vpop.f32.mrf.mxu0
    %v934 = vadd.f32 0.0, %v933
    %v935 = vpop.f32.mrf.mxu0
    %936 = vmatprep.mubr.f32.mxu0 0.0
    %937 = vmatmul.mubr.f32.gmra.mxu0 %v865
    %v938 = vpop.f32.mrf.mxu0
    %v939 = vadd.f32 0.0, %v938
    %v940 = vpop.f32.mrf.mxu0
    %941 = vdwg.mxu0
    %v942 = vmul.f32 %v67, %v853
    %v943 = vmul.f32 %v68, %v858
    %v944 = vmul.f32 %v69, %v934
    %v945 = vmul.f32 %v70, %v939
    %950 = vrot.lane.b32.xlu0 %v853, 96
    %v951 = vpop.permute.xlu0 %950
    %952 = vrot.lane.b32.xlu0 %v858, 96
    %v953 = vpop.permute.xlu0 %952
    %954 = vrot.lane.b32.xlu0 %v934, 96
    %v955 = vpop.permute.xlu0 %954
    %956 = vrot.lane.b32.xlu0 %v939, 96
    %v957 = vpop.permute.xlu0 %956
    %v962 = vmul.f32 %v67, %v951
    %v963 = vmul.f32 %v68, %v953
    %v964 = vmul.f32 %v69, %v955
    %v965 = vmul.f32 %v70, %v957
    %966 = vrot.lane.b32.xlu0 %v853, 32
    %v967 = vpop.permute.xlu0 %966
    %968 = vrot.lane.b32.xlu0 %v858, 32
    %v969 = vpop.permute.xlu0 %968
    %970 = vrot.lane.b32.xlu0 %v934, 32
    %v971 = vpop.permute.xlu0 %970
    %972 = vrot.lane.b32.xlu0 %v939, 32
    %v973 = vpop.permute.xlu0 %972
    %982 = vrot.lane.b32.xlu0 %v942, 64
    %v983 = vpop.permute.xlu0 %982
    %984 = vrot.lane.b32.xlu0 %v943, 64
    %v985 = vpop.permute.xlu0 %984
    %986 = vrot.lane.b32.xlu0 %v944, 64
    %v987 = vpop.permute.xlu0 %986
    %988 = vrot.lane.b32.xlu0 %v945, 64
    %v989 = vpop.permute.xlu0 %988
    %998 = vrot.lane.b32.xlu0 %v962, 96
    %v999 = vpop.permute.xlu0 %998
    %1000 = vrot.lane.b32.xlu0 %v963, 96
    %v1001 = vpop.permute.xlu0 %1000
    %1002 = vrot.lane.b32.xlu0 %v964, 96
    %v1003 = vpop.permute.xlu0 %1002
    %1004 = vrot.lane.b32.xlu0 %v965, 96
    %v1005 = vpop.permute.xlu0 %1004
    %v1010 = vsel %vm87, %v67, %v967
    %v1011 = vsel %vm87, %v68, %v969
    %v1012 = vsel %vm87, %v69, %v971
    %v1013 = vsel %vm87, %v70, %v973
    %vm1014 = vcmask 523264
    %v1015 = vsel %vm1014, %v1010, %v983
    %v1016 = vsel %vm1014, %v1011, %v985
    %v1017 = vsel %vm1014, %v1012, %v987
    %v1018 = vsel %vm1014, %v1013, %v989
    %vm1019 = vcmask 785408
    %v1020 = vsel %vm1019, %v1015, %v999
    %v1021 = vsel %vm1019, %v1016, %v1001
    %v1022 = vsel %vm1019, %v1017, %v1003
    %v1023 = vsel %vm1019, %v1018, %v1005
    %1024 = vst [vmem:[#allocation11] sm:$0xff] %v1020
    %1025 = vst [vmem:[#allocation11 + $0x8] sm:$0xff] %v1021
    %1026 = vst [vmem:[#allocation11 + $0x10] sm:$0xff] %v1022
    %1027 = vst [vmem:[#allocation11 + $0x18] sm:$0xff] %v1023
    // Predicated region
    $region34: #{tpu_custom_call.1} parent=1 // pred_check
      _
    $region35: #{tpu_custom_call.1} parent=1 // pred_check_branch
      %1029 = sbr.rel (0) target = $region37
    $region36: #{tpu_custom_call.1} parent=1 // pred_region
      %s1031 = ssub.s32 512, 512
      %1032 = vsyncadd [#allocation8], %s1031
      %s1033 = sshll.u32 [#allocation11], 4
      %s1034 = int_to_ptr.vmem [resolvable:$true] %s1033
      %1039 = dma.vmem_to_hbm [thread:$0]  %s1034, 512, %s8, [#allocation8], 128, 128, 8
    $region37: #{tpu_custom_call.1} parent=1 // pred_fallthru
      _
    // Predicated region
    $region38: #{tpu_custom_call.1} parent=1 // pred_check
      _
    $region39: #{tpu_custom_call.1} parent=1 // pred_check_branch
      %1041 = sbr.rel (0) target = $region41
    $region40: #{tpu_custom_call.1} parent=1 // pred_region
      %1042 = dma.done [#allocation8], 512
    $region41: #{tpu_custom_call.1} parent=1 // pred_fallthru
      _
    %1043 = vsyncpa [#allocation7], 1
    %1044 = vsyncpa [#allocation10], 1
    %1045 = vsyncpa [#allocation8], 1

</llo_original>
